<compile_context>
chip_gen: v6e
topology: v6e:2x2x1
jax: 0.10.0
libtpu: 0.0.40
codegen_flags: <defaults>
</compile_context>

<pallas_src>
import functools

import jax
import jax.numpy as jnp
from jax.experimental import pallas as pl
from jax.experimental.pallas import tpu as pltpu


def _bitparm_kernel(x_ref, p_ref, o_ref, *, final, approx_recip):
    """Elementwise BitParm block.

    x_ref: (TM, TN) activations.
    p_ref: (TM, K) per-row params in f32:
           col 0 = softplus(h), col 1 = b, col 2 = tanh(a) (non-final only).
    """
    x = x_ref[...].astype(jnp.float32)          # f32 compute (v5e has no bf16 VPU/EUP)
    sph = p_ref[:, 0:1]                         # (TM, 1) broadcast over lanes
    bb = p_ref[:, 1:2]
    y = x * sph + bb
    if final:
        # sigmoid(y) = 1 / (1 + exp(-y)); exp on the EUP, reciprocal optionally
        # on the EUP too (approx) -> keeps the VPU slot free.
        e = jnp.exp(-y)
        o_ref[...] = pl.reciprocal(1.0 + e, approx=approx_recip).astype(o_ref.dtype)
    else:
        tha = p_ref[:, 2:3]
        o_ref[...] = (y + jnp.tanh(y) * tha).astype(o_ref.dtype)


def _round_up(v, m):
    return -(-v // m) * m


def multi_head_bitparm(x, h, b, a=None, *, final=False, tile_m=256, tile_n=4096,
                       approx_sigmoid=False):
    """Forward pass of MultiHeadBitparm.

    x: (G, B, C, H, W) in ('g','bs','ch','h','w') layout.
    params h/b/a: (G, 1, C, 1, 1).
    """
    # TODO(synk): the ('bs','ch','g','h','w') param layout variant is not wired up.
    G, B, C, H, W = x.shape
    M = G * B * C
    N = H * W

    # Pure reshape (native memory order), no data movement.
    x2 = x.reshape(M, N)

    # Lane-dense output: pad the lane dim up to a 128 multiple if needed so
    # every output store is an unmasked vst (biggest measured lever for
    # streaming kernels). No-op for the common H*W % 128 == 0 case.
    n_pad = _round_up(N, 128)
    if n_pad != N:
        x2 = jnp.pad(x2, ((0, 0), (0, n_pad - N)))

    # Precompute per-(g, c) transcendentals once in f32 (G*C scalars), expand
    # to per-row vectors and merge into a single (M, K) param array.
    def _to_rows(p_gc):
        return jnp.broadcast_to(p_gc[:, None, :], (G, B, C)).reshape(M, 1)

    h_gc = h.reshape(G, C).astype(jnp.float32)
    b_gc = b.reshape(G, C).astype(jnp.float32)
    cols = [_to_rows(jnp.logaddexp(h_gc, 0.0)),   # softplus(h), numerically stable
            _to_rows(b_gc)]
    if not final:
        assert a is not None
        cols.append(_to_rows(jnp.tanh(a.reshape(G, C).astype(jnp.float32))))
    params = jnp.concatenate(cols, axis=1)        # (M, K) f32
    K = params.shape[1]

    # Sublane alignment: 8 for 32-bit, 16 for 16-bit (bf16 sublane packing),
    # 32 for 8-bit dtypes.  tile_m default (256) satisfies all of them.
    itemsize = jnp.dtype(x.dtype).itemsize
    m_align = {4: 8, 2: 16, 1: 32}.get(itemsize, 8)

    tm = M if M <= tile_m else tile_m             # tile_m: multiple of 8/16/32
    tn = n_pad if n_pad <= tile_n else tile_n     # tile_n: multiple of 128

    # v7x megacore: guarantee >= 2 blocks along a 'parallel' axis so both
    # TensorCores get work when the whole problem would fit in one block.
    if pl.cdiv(M, tm) * pl.cdiv(n_pad, tn) < 2:
        half_m = _round_up(pl.cdiv(M, 2), m_align)
        half_n = _round_up(pl.cdiv(n_pad, 2), 128)
        if half_m < M:
            tm = half_m
        elif half_n < n_pad:
            tn = half_n
        # else: too small to split further; single block is fine.

    grid = (pl.cdiv(M, tm), pl.cdiv(n_pad, tn))   # lane axis innermost

    x_spec = pl.BlockSpec((tm, tn), lambda i, j: (i, j))
    p_spec = pl.BlockSpec((tm, K), lambda i, j: (i, 0))   # re-DMA elided across j

    # Explicit scoped-VMEM limit: covers the double-buffered in+out footprint
    # on every generation (v5e default is only 16 MiB) while never planning
    # for more than 48 MiB (v7x has 64 MiB physical VMEM per TC).
    block_bytes = tm * tn * itemsize
    footprint = 2 * (2 * block_bytes + tm * 128 * 4)      # dbl-buffered x+out+params
    vmem_limit = int(max(32 << 20, min(48 << 20, footprint + (4 << 20))))

    kernel = functools.partial(_bitparm_kernel, final=final,
                               approx_recip=approx_sigmoid)

    out2 = pl.pallas_call(
        kernel,
        out_shape=jax.ShapeDtypeStruct((M, n_pad), x.dtype),
        grid_spec=pltpu.PrefetchScalarGridSpec(
            num_scalar_prefetch=0,
            grid=grid,
            in_specs=[x_spec, p_spec],
            out_specs=x_spec,
        ),
        compiler_params=pltpu.CompilerParams(
            dimension_semantics=("parallel", "parallel"),
            vmem_limit_bytes=vmem_limit),
    )(x2, params)

    if n_pad != N:
        out2 = out2[:, :N]

    # Pure reshape back to the original layout, no transpose.
    return out2.reshape(G, B, C, H, W)


def _reference(x, h, b, a=None, *, final=False):
    sp_h = jnp.logaddexp(h.astype(jnp.float32), 0.0)
    y = x.astype(jnp.float32) * sp_h + b.astype(jnp.float32)
    if final:
        return jax.nn.sigmoid(y).astype(x.dtype)
    return (y + jnp.tanh(y) * jnp.tanh(a.astype(jnp.float32))).astype(x.dtype)


if __name__ == "__main__":
    # Module config: channel=4, nb_head=2, shape=('g','bs','ch','h','w'),
    # bitparm_init_mode='normal', bitparm_init_range=0.01
    nb_head, channel = 2, 4
    B, H, W = 2, 16, 16

    key = jax.random.PRNGKey(0)
    kx, kh, kb, ka = jax.random.split(key, 4)

    # deterministic normal(0, 0.01) init, same shapes as the PyTorch params
    params_shape = (nb_head, 1, channel, 1, 1)
    h = (0.01 * jax.random.normal(kh, (nb_head, channel))).reshape(params_shape).astype(jnp.float32)
    b = (0.01 * jax.random.normal(kb, (nb_head, channel))).reshape(params_shape).astype(jnp.float32)
    a = (0.01 * jax.random.normal(ka, (nb_head, channel))).reshape(params_shape).astype(jnp.float32)

    # x in ('g','bs','ch','h','w') layout
    x = jax.random.normal(kx, (nb_head, B, channel, H, W), dtype=jnp.float32)

    # non-final variant (default: final=False)
    out = multi_head_bitparm(x, h, b, a, final=False)
    out = jax.block_until_ready(out)
    ref = _reference(x, h, b, a, final=False)
    assert out.shape == x.shape
    assert jnp.allclose(out, ref, atol=1e-5, rtol=1e-5)

    # final variant, exact sigmoid path (default)
    out_f = multi_head_bitparm(x, h, b, final=True)
    out_f = jax.block_until_ready(out_f)
    ref_f = _reference(x, h, b, final=True)
    assert jnp.allclose(out_f, ref_f, atol=1e-5, rtol=1e-5)

    # final variant, EUP approx-reciprocal path (looser tolerance)
    out_fa = multi_head_bitparm(x, h, b, final=True, approx_sigmoid=True)
    out_fa = jax.block_until_ready(out_fa)
    assert jnp.allclose(out_fa, ref_f, atol=1e-2, rtol=1e-2)

    print("KERNEL_OK")
</pallas_src>

<mosaic_0001>
module attributes {stable_mosaic.version = 11 : i64} {
  func.func @_bitparm_kernel(%arg0: i32, %arg1: i32, %arg2: memref<8x256xf32, #tpu.memory_space<vmem>>, %arg3: memref<8x3xf32, #tpu.memory_space<vmem>>, %arg4: memref<8x256xf32, #tpu.memory_space<vmem>>) attributes {dimension_semantics = [#tpu.dimension_semantics<parallel>, #tpu.dimension_semantics<parallel>], iteration_bounds = array<i64: 2, 1>, scalar_prefetch = 0 : i64, scratch_operands = 0 : i64, tpu.core_type = #tpu.core_type<tc>, window_params = [{transform_indices = @transform_0, window_bounds = array<i64: 8, 256>}, {transform_indices = @transform_1, window_bounds = array<i64: 8, 3>}, {transform_indices = @transform_2, window_bounds = array<i64: 8, 256>}]} {
    %c0 = arith.constant 0 : index
    %c0_0 = arith.constant 0 : index
    %0 = vector.load %arg2[%c0, %c0_0] : memref<8x256xf32, #tpu.memory_space<vmem>>, vector<8x256xf32>
    %c0_1 = arith.constant 0 : index
    %c0_2 = arith.constant 0 : index
    %1 = vector.load %arg3[%c0_1, %c0_2] : memref<8x3xf32, #tpu.memory_space<vmem>>, vector<8x1xf32>
    %c0_3 = arith.constant 0 : index
    %c1 = arith.constant 1 : index
    %2 = vector.load %arg3[%c0_3, %c1] : memref<8x3xf32, #tpu.memory_space<vmem>>, vector<8x1xf32>
    %3 = vector.broadcast %1 : vector<8x1xf32> to vector<8x256xf32>
    %4 = arith.mulf %0, %3 : vector<8x256xf32>
    %5 = vector.broadcast %2 : vector<8x1xf32> to vector<8x256xf32>
    %6 = arith.addf %4, %5 : vector<8x256xf32>
    %c0_4 = arith.constant 0 : index
    %c2 = arith.constant 2 : index
    %7 = vector.load %arg3[%c0_4, %c2] : memref<8x3xf32, #tpu.memory_space<vmem>>, vector<8x1xf32>
    %8 = math.tanh %6 : vector<8x256xf32>
    %9 = vector.broadcast %7 : vector<8x1xf32> to vector<8x256xf32>
    %10 = arith.mulf %8, %9 : vector<8x256xf32>
    %11 = arith.addf %6, %10 : vector<8x256xf32>
    %c0_5 = arith.constant 0 : index
    %c0_6 = arith.constant 0 : index
    %12 = vector.load %arg4[%c0_5, %c0_6] : memref<8x256xf32, #tpu.memory_space<vmem>>, vector<8x256xf32>
    tpu.vector_store %arg4[%c0_5, %c0_6], %11 {strides = array<i32>} : memref<8x256xf32, #tpu.memory_space<vmem>>, vector<8x256xf32>,
    return
  }
  func.func @transform_0(%arg0: i32, %arg1: i32) -> (i32, i32) {
    %c0_i32 = arith.constant 0 : i32
    return %arg0, %arg1 : i32, i32
  }
  func.func @transform_1(%arg0: i32, %arg1: i32) -> (i32, i32) {
    %c0_i32 = arith.constant 0 : i32
    %c0_i32_0 = arith.constant 0 : i32
    return %arg0, %c0_i32 : i32, i32
  }
  func.func @transform_2(%arg0: i32, %arg1: i32) -> (i32, i32) {
    %c0_i32 = arith.constant 0 : i32
    return %arg0, %arg1 : i32, i32
  }
}

</mosaic_0001>

<llo_original>
// kernel: tpu_custom_call.1
$region0: #{tpu_custom_call.1}
  #allocation0 [shape = 'u32[]', space=smem, size = 0x4, offset = 0x4, fixed_abs, tag = 'smem constant byte address 0x4 - core index']
  #allocation1 [shape = 'u32[144,128]{1,0:T(1,128)}', space=vmem, size = 0x12000, scoped, tag = 'internal scratch']
  %s0 = inlined_call_operand.hbm [shape: f32[16,256], index: 0, kind: input, shape index: {}]
  %s1 = inlined_call_operand.vmem [shape: f32[16,3], index: 1, kind: input, shape index: {}]
  %s2 = inlined_call_operand.hbm [shape: f32[16,256], index: 2, kind: output, shape index: {}]
  %s3 = sld [smem:[#allocation0]]
  $region45: #{tpu_custom_call.1} parent=0
    _
  %s5 = ssub.s32 1, %s3
  %s6 = scalar_select 0, %s5, %s3
  $region1: #{tpu_custom_call.1} parent=0
    #allocation2 [shape = 'u8[16384]{0}', space=vmem, size = 0x4000, scoped, tag = 'input window, operand 0']
    #allocation3 [shape = 's32[2]{0}', space=sflag, size = 0x8, scoped, tag = 'scoped memory for tpu_custom_call.1']
    #allocation4 [shape = 's32[2]{0}', space=sflag, size = 0x8, scoped, tag = 'scoped memory for tpu_custom_call.1']
    #allocation5 [shape = 'u8[16384]{0}', space=vmem, size = 0x4000, scoped, tag = 'output window, operand 0']
    %7 = vsyncpa [#allocation3], 0
    %s8 = scalar_lea.sflag [#allocation3], 1
    %9 = vsyncpa %s8, 0
    %10 = vsyncpa [#allocation4], 0
    %s11 = scalar_lea.sflag [#allocation4], 1
    %12 = vsyncpa %s11, 0
    loop: start=0, step=1, limit=4
    $region2: #{tpu_custom_call.1} parent=1 // loop_pre_header
      _
    $region3: #{tpu_custom_call.1} parent=1 // loop_header
      %s14 = sphi 0, %s18
      %p15 = scmp.ge.s32.totalorder %s14, 4
      %s21 = sphi 0, %s33
      %s22 = sphi 0, %s29
      %s23 = sphi 0, %s21
      %s24 = sphi 0, %s22
      %s25 = sphi 0, %s23
      %s26 = sphi 0, %s24
      %s38 = sphi 0, %s40
      %s41 = sphi 0, %s38
      %s42 = sphi 0, %s41
      %s58 = sphi 0, %s42
      %s64 = sphi 0, %s66
      %s67 = sphi 0, %s64
      %s68 = sphi 0, %s67
      %s84 = sphi 0, %s68
      %s92 = sphi 0, %s94
      %s95 = sphi 0, %s92
      %s96 = sphi 0, %s95
      %s112 = sphi 0, %s96
    $region4: #{tpu_custom_call.1} parent=1 // loop_header_branch
      %17 = sbr.rel (%p15) target = $region8
    $region5: #{tpu_custom_call.1} parent=1 // loop_body
      %s19 = ssub.s32 %s14, 1
      %s20 = ssub.s32 %s14, 2
      %s27 = sadd.s32 1, %s22
      %p28 = scmp.ge.s32.totalorder %s27, 1
      %s29 = scalar_select %p28, 0, %s27
      %s30 = sadd.s32 1, %s21
      %s31 = scalar_select %p28, %s30, %s21
      %p32 = scmp.ge.s32.totalorder %s31, 2
      %s33 = scalar_select %p32, 0, %s31
      %s34 = ssub.s32 %s21, %s33
      %s35 = ssub.s32 %s22, %s29
      %s36 = sor.u32 %s34, %s35
      %p37 = scmp.eq.s32.totalorder %s36, 0
      %s39 = sadd.s32 %s38, 1
      %s40 = scalar_select %p37, %s38, %s39
      %p43 = pneg %p37
      %p44 = scmp.eq.s32.totalorder %s14, 1
      %p45 = por %p43, %p44
      %p46 = scmp.ne.s32.totalorder %s38, %s41
      %p47 = scmp.eq.s32.totalorder %s14, 0
      %p48 = por %p46, %p47
      %p49 = scmp.ne.s32.totalorder %s38, %s41
      %p50 = scmp.eq.s32.totalorder %s19, 1
      %p51 = por %p49, %p50
      %p52 = scmp.ne.s32.totalorder %s41, %s42
      %p53 = scmp.eq.s32.totalorder %s19, 0
      %p54 = por %p52, %p53
      %p55 = scmp.ne.s32.totalorder %s41, %s42
      %p56 = scmp.eq.s32.totalorder %s20, 1
      %p57 = por %p55, %p56
      %p59 = scmp.ne.s32.totalorder %s42, %s58
      %p60 = scmp.eq.s32.totalorder %s20, 0
      %p61 = por %p59, %p60
      %s62 = ssub.s32 %s21, %s33
      %p63 = scmp.eq.s32.totalorder %s62, 0
      %s65 = sadd.s32 %s64, 1
      %s66 = scalar_select %p63, %s64, %s65
      %p69 = pneg %p63
      %p70 = scmp.eq.s32.totalorder %s14, 1
      %p71 = por %p69, %p70
      %p72 = scmp.ne.s32.totalorder %s64, %s67
      %p73 = scmp.eq.s32.totalorder %s14, 0
      %p74 = por %p72, %p73
      %p75 = scmp.ne.s32.totalorder %s64, %s67
      %p76 = scmp.eq.s32.totalorder %s19, 1
      %p77 = por %p75, %p76
      %p78 = scmp.ne.s32.totalorder %s67, %s68
      %p79 = scmp.eq.s32.totalorder %s19, 0
      %p80 = por %p78, %p79
      %p81 = scmp.ne.s32.totalorder %s67, %s68
      %p82 = scmp.eq.s32.totalorder %s20, 1
      %p83 = por %p81, %p82
      %p85 = scmp.ne.s32.totalorder %s68, %s84
      %p86 = scmp.eq.s32.totalorder %s20, 0
      %p87 = por %p85, %p86
      %s88 = ssub.s32 %s21, %s33
      %s89 = ssub.s32 %s22, %s29
      %s90 = sor.u32 %s88, %s89
      %p91 = scmp.eq.s32.totalorder %s90, 0
      %s93 = sadd.s32 %s92, 1
      %s94 = scalar_select %p91, %s92, %s93
      %p97 = pneg %p91
      %p98 = scmp.eq.s32.totalorder %s14, 1
      %p99 = por %p97, %p98
      %p100 = scmp.ne.s32.totalorder %s92, %s95
      %p101 = scmp.eq.s32.totalorder %s14, 0
      %p102 = por %p100, %p101
      %p103 = scmp.ne.s32.totalorder %s92, %s95
      %p104 = scmp.eq.s32.totalorder %s19, 1
      %p105 = por %p103, %p104
      %p106 = scmp.ne.s32.totalorder %s95, %s96
      %p107 = scmp.eq.s32.totalorder %s19, 0
      %p108 = por %p106, %p107
      %p109 = scmp.ne.s32.totalorder %s95, %s96
      %p110 = scmp.eq.s32.totalorder %s20, 1
      %p111 = por %p109, %p110
      %p113 = scmp.ne.s32.totalorder %s96, %s112
      %p114 = scmp.eq.s32.totalorder %s20, 0
      %p115 = por %p113, %p114
      %p116 = scmp.le.s32.totalorder 1, %s14
      %p117 = scmp.lt.s32.totalorder %s14, 3
      %p118 = pnand %p116, %p117
      %p119 = pneg %p118
      // Predicated region
      $region9: #{tpu_custom_call.1} parent=5 // pred_check
        _
      $region10: #{tpu_custom_call.1} parent=5 // pred_check_branch
        %121 = sbr.rel (%p118) target = $region12
      $region11: #{tpu_custom_call.1} parent=5 // pred_region
        %s122 = ssub.s32 %s14, 1
      $region12: #{tpu_custom_call.1} parent=5 // pred_fallthru
        _
      %p123 = scmp.lt.s32.totalorder %s14, 2
      // Predicated region
      $region13: #{tpu_custom_call.1} parent=5 // pred_check
        %p124 = pneg %p123
      $region14: #{tpu_custom_call.1} parent=5 // pred_check_branch
        %126 = sbr.rel (%p124) target = $region16
      $region15: #{tpu_custom_call.1} parent=5 // pred_region
        // Predicated region
        $region17: #{tpu_custom_call.1} parent=15 // pred_check
          %p127 = pneg %p48
        $region18: #{tpu_custom_call.1} parent=15 // pred_check_branch
          %129 = sbr.rel (%p127) target = $region20
        $region19: #{tpu_custom_call.1} parent=15 // pred_region
          %s130 = sand.u32 %s38, 1
          %s131 = scalar_lea.sflag [#allocation3], %s130
          %s132 = sand.u32 %s38, 1
          %s133 = smul.addr %s132, 16
          %s134 = scalar_lea.vmem [#allocation2], %s133
          %s135 = smul.u32 2, %s22
          %s137 = ssub.s32 256, 256
          %138 = vsyncadd %s131, %s137
          %s139 = smul.addr %s21, 2
          %s140 = sadd.s32 %s135, %s139
          %s141 = smul.addr %s140, 128
          %s142 = scalar_lea.hbm %s0, %s141
          %s144 = sshll.u32 %s134, 4
          %s145 = int_to_ptr.vmem [resolvable:$true] %s144
          %147 = dma.hbm_to_vmem [thread:$0]  %s142, 256, %s145, %s131
        $region20: #{tpu_custom_call.1} parent=15 // pred_fallthru
          _
        // Predicated region
        $region21: #{tpu_custom_call.1} parent=15 // pred_check
          %p148 = pneg %p74
        $region22: #{tpu_custom_call.1} parent=15 // pred_check_branch
          %150 = sbr.rel (%p148) target = $region24
        $region23: #{tpu_custom_call.1} parent=15 // pred_region
          %p151 = scmp.lt.s32.totalorder %s21, 1
          %s152 = scalar_select %p151, %s21, 1
          %s153 = smul.addr %s152, 8
          %s154 = scalar_lea.vmem %s1, %s153
        $region24: #{tpu_custom_call.1} parent=15 // pred_fallthru
          _
      $region16: #{tpu_custom_call.1} parent=5 // pred_fallthru
        _
      %p155 = scmp.le.s32.totalorder 1, %s14
      %p156 = scmp.lt.s32.totalorder %s14, 3
      %p157 = pnand %p155, %p156
      %p158 = pneg %p157
      // Predicated region
      $region25: #{tpu_custom_call.1} parent=5 // pred_check
        _
      $region26: #{tpu_custom_call.1} parent=5 // pred_check_branch
        %160 = sbr.rel (%p157) target = $region28
      $region27: #{tpu_custom_call.1} parent=5 // pred_region
        %s161 = ssub.s32 %s14, 1
        %s162 = sand.u32 %s41, 1
        %s163 = scalar_lea.sflag [#allocation3], %s162
        %s164 = sand.u32 %s41, 1
        %s165 = smul.addr %s164, 16
        %s166 = scalar_lea.vmem [#allocation2], %s165
        // Predicated region
        $region29: #{tpu_custom_call.1} parent=27 // pred_check
          %p167 = pneg %p54
        $region30: #{tpu_custom_call.1} parent=27 // pred_check_branch
          %169 = sbr.rel (%p167) target = $region32
        $region31: #{tpu_custom_call.1} parent=27 // pred_region
          %170 = dma.done %s163, 256
        $region32: #{tpu_custom_call.1} parent=27 // pred_fallthru
          _
        %s171 = sand.u32 %s41, 1
        %s172 = scalar_lea.sflag [#allocation3], %s171
        %s173 = sand.u32 %s41, 1
        %s174 = smul.addr %s173, 16
        %s175 = scalar_lea.vmem [#allocation2], %s174
        %p176 = pneg %p54
        %p177 = pneg %p51
        %p178 = scmp.lt.s32.totalorder %s23, 1
        %s179 = scalar_select %p178, %s23, 1
        %s180 = smul.addr %s179, 8
        %s181 = scalar_lea.vmem %s1, %s180
        %p182 = pneg %p80
        %p183 = pneg %p77
        %p184 = pneg %p108
        %p185 = pneg %p105
        %s186 = sand.u32 %s95, 1
        %s187 = scalar_lea.sflag [#allocation4], %s186
        %s188 = sand.u32 %s95, 1
        %s189 = smul.addr %s188, 16
        %s190 = scalar_lea.vmem [#allocation5], %s189
        %s191 = smul.u32 2, %s24
        %p192 = scmp.lt.s32.totalorder %s23, 1
        %s193 = scalar_select %p192, %s23, 1
        %s194 = smul.addr %s193, 8
        %s195 = scalar_lea.vmem %s1, %s194
        %s196 = smul.u32 2, %s24
        %v197 = vld [vmem:[%s166] sm:$0xff]
        %v198 = vld [vmem:[%s166 + $0x8] sm:$0xff]
        %v199 = vld [vmem:[%s195] sm:$0xff]
        %201 = vset.pattern.permute.xlu0 0
        %202 = vperm.xlu0 %201, %v199
        %v203 = vpop.permute.xlu0 %202
        %v205 = vmul.f32 %v197, %v203
        %v206 = vmul.f32 %v198, %v203
        %207 = vset.pattern.permute.xlu0 1
        %208 = vperm.xlu0 %207, %v199
        %v209 = vpop.permute.xlu0 %208
        %v211 = vadd.f32 %v205, %v209
        %v212 = vadd.f32 %v206, %v209
        %v213 = vtanh.pop %v211
        %v214 = vtanh.pop %v212
        %215 = vset.pattern.permute.xlu0 2
        %216 = vperm.xlu0 %215, %v199
        %v217 = vpop.permute.xlu0 %216
        %v219 = vmul.f32 %v213, %v217
        %v220 = vmul.f32 %v214, %v217
        %v221 = vadd.f32 %v211, %v219
        %v222 = vadd.f32 %v212, %v220
        %223 = vst [vmem:[%s190] sm:$0xff] %v221
        %224 = vst [vmem:[%s190 + $0x8] sm:$0xff] %v222
        %s225 = sand.u32 %s95, 1
        %s226 = scalar_lea.sflag [#allocation4], %s225
        %s227 = sand.u32 %s95, 1
        %s228 = smul.addr %s227, 16
        %s229 = scalar_lea.vmem [#allocation5], %s228
        // Predicated region
        $region33: #{tpu_custom_call.1} parent=27 // pred_check
          %p230 = pneg %p105
        $region34: #{tpu_custom_call.1} parent=27 // pred_check_branch
          %232 = sbr.rel (%p230) target = $region36
        $region35: #{tpu_custom_call.1} parent=27 // pred_region
          %s233 = smul.u32 2, %s24
          %s235 = ssub.s32 256, 256
          %236 = vsyncadd %s226, %s235
          %s237 = smul.addr %s23, 2
          %s238 = sadd.s32 %s233, %s237
          %s239 = smul.addr %s238, 128
          %s240 = scalar_lea.hbm %s2, %s239
          %s242 = sshll.u32 %s229, 4
          %s243 = int_to_ptr.vmem [resolvable:$true] %s242
          %245 = dma.vmem_to_hbm [thread:$0]  %s243, 256, %s240, %s226
        $region36: #{tpu_custom_call.1} parent=27 // pred_fallthru
          _
      $region28: #{tpu_custom_call.1} parent=5 // pred_fallthru
        _
      %p246 = scmp.le.s32.totalorder 2, %s14
      // Predicated region
      $region37: #{tpu_custom_call.1} parent=5 // pred_check
        %p247 = pneg %p246
      $region38: #{tpu_custom_call.1} parent=5 // pred_check_branch
        %249 = sbr.rel (%p247) target = $region40
      $region39: #{tpu_custom_call.1} parent=5 // pred_region
        %s250 = ssub.s32 %s14, 2
        // Predicated region
        $region41: #{tpu_custom_call.1} parent=39 // pred_check
          %p251 = pneg %p111
        $region42: #{tpu_custom_call.1} parent=39 // pred_check_branch
          %253 = sbr.rel (%p251) target = $region44
        $region43: #{tpu_custom_call.1} parent=39 // pred_region
          %s254 = sand.u32 %s96, 1
          %s255 = scalar_lea.sflag [#allocation4], %s254
          %s256 = sand.u32 %s96, 1
          %s257 = smul.addr %s256, 16
          %s258 = scalar_lea.vmem [#allocation5], %s257
          %259 = dma.done %s255, 256
        $region44: #{tpu_custom_call.1} parent=39 // pred_fallthru
          _
      $region40: #{tpu_custom_call.1} parent=5 // pred_fallthru
        _
    $region6: #{tpu_custom_call.1} parent=1 // loop_footer
      %s18 = sadd.s32 1, %s14
    $region7: #{tpu_custom_call.1} parent=1 // loop_footer_branch
      %13 = sbr.rel target = $region3
    $region8: #{tpu_custom_call.1} parent=1 // loop_exit
      _
    %260 = vsyncpa [#allocation3], 1
    %s261 = scalar_lea.sflag [#allocation3], 1
    %262 = vsyncpa %s261, 1
    %263 = vsyncpa [#allocation4], 1
    %s264 = scalar_lea.sflag [#allocation4], 1
    %265 = vsyncpa %s264, 1

</llo_original>
